<compile_context>
chip_gen: v5e
topology: v5e:2x2
jax: 0.10.0
libtpu: 0.0.40
codegen_flags: <defaults>
</compile_context>

<pallas_src>
import jax
import jax.numpy as jnp
from jax.experimental import pallas as pl
from jax.experimental.pallas import tpu as pltpu

D = 28 * 28  # 784 input features


def _logreg_kernel(x_ref, w_ref, b_ref, o_ref):
    # x_ref: (TB, D) VMEM   w_ref: (1, D) VMEM   b_ref: (1,) SMEM   o_ref: (TB, 1) VMEM
    # VPU elementwise multiply (sublane-broadcast of the weight row) + XLU lane
    # reduction -- avoids driving the MXU with an N=1 matmul (127/128 lanes wasted).
    z = jnp.sum(x_ref[...] * w_ref[...], axis=-1, keepdims=True)
    z = z + b_ref[0]                                   # scalar bias from SMEM
    # sigmoid(z) = 1 / (1 + exp(-z)); exp and approx reciprocal both run on the
    # otherwise-idle EUP slot.
    o_ref[...] = pl.reciprocal(1.0 + jnp.exp(-z), approx=True)


def logistic_regression_forward(x, weight, bias, *, block_b=1024):
    """sigmoid(x @ weight.T + bias).

    x: (B, 784) f32, weight: (1, 784) f32 (torch nn.Linear layout), bias: (1,) f32.
    Returns (B, 1) f32.
    """
    B, d = x.shape
    assert d == D

    # Batch tile: multiple of 8 (sublane granularity), capped so two
    # double-buffered x tiles (2 * tb * 784 * 4B) stay well inside the default
    # scoped VMEM limit on every TPU generation (v5e 16 MiB .. v7x 32 MiB).
    tb = min(block_b, max(8, ((B + 7) // 8) * 8))
    Bp = ((B + tb - 1) // tb) * tb
    if Bp != B:
        x = jnp.pad(x, ((0, Bp - B), (0, 0)))

    out = pl.pallas_call(
        _logreg_kernel,
        out_shape=jax.ShapeDtypeStruct((Bp, 1), jnp.float32),
        grid_spec=pltpu.PrefetchScalarGridSpec(
            num_scalar_prefetch=0,
            grid=(Bp // tb,),
            in_specs=[
                # x: tiled along batch -> pipelined, double-buffered DMA.
                pl.BlockSpec((tb, D), lambda i: (i, 0)),
                # weight row: same block every step -> stays resident in VMEM.
                pl.BlockSpec((1, D), lambda i: (0, 0)),
                # bias: single f32 scalar, placed whole in SMEM (no VMEM tile).
                pl.BlockSpec(memory_space=pltpu.MemorySpace.SMEM),
            ],
            out_specs=pl.BlockSpec((tb, 1), lambda i: (i, 0)),
        ),
        compiler_params=pltpu.CompilerParams(
            # Independent per-row work; lets v7x shard grid steps across 2 TCs,
            # neutral on single-TC v5e/v6e.
            dimension_semantics=("parallel",)),
    )(x, weight, bias)
    return out[:B]


if __name__ == "__main__":
    key = jax.random.PRNGKey(0)
    kx, kw, kb = jax.random.split(key, 3)

    B = 8  # small example batch of flattened 28x28 images

    x = jax.random.normal(kx, (B, D), dtype=jnp.float32)

    # Deterministic parameter init mirroring nn.Linear(784, 1) default
    # (uniform in [-1/sqrt(in_features), 1/sqrt(in_features)]).
    bound = 1.0 / (D ** 0.5)
    weight = jax.random.uniform(kw, (1, D), minval=-bound, maxval=bound,
                                dtype=jnp.float32)
    bias = jax.random.uniform(kb, (1,), minval=-bound, maxval=bound,
                              dtype=jnp.float32)

    out = logistic_regression_forward(x, weight, bias)
    out = jax.block_until_ready(out)

    # Reference check against plain JAX (tolerance relaxed slightly for the
    # EUP approximate reciprocal in the sigmoid).
    ref = jax.nn.sigmoid(x @ weight.T + bias)
    assert out.shape == (B, 1)
    assert jnp.allclose(out, ref, atol=2e-3, rtol=2e-3)

    print("KERNEL_OK")
</pallas_src>

<mosaic_0001>
module attributes {stable_mosaic.version = 11 : i64} {
  func.func @_logreg_kernel(%arg0: i32, %arg1: memref<8x784xf32, #tpu.memory_space<vmem>>, %arg2: memref<1x784xf32, #tpu.memory_space<vmem>>, %arg3: memref<1xf32, #tpu.memory_space<smem>>, %arg4: memref<8x1xf32, #tpu.memory_space<vmem>>) attributes {dimension_semantics = [#tpu.dimension_semantics<parallel>], iteration_bounds = array<i64: 1>, scalar_prefetch = 0 : i64, scratch_operands = 0 : i64, tpu.core_type = #tpu.core_type<tc>, window_params = [{transform_indices = @transform_0, window_bounds = array<i64: 8, 784>}, {pipeline_mode = #tpu.pipeline_mode<synchronous>, transform_indices = @transform_1, window_bounds = array<i64: 1, 784>}, {transform_indices = @transform_2, window_bounds = array<i64: 1>}, {transform_indices = @transform_3, window_bounds = array<i64: 8, 1>}]} {
    %c0 = arith.constant 0 : index
    %c0_0 = arith.constant 0 : index
    %0 = vector.load %arg1[%c0, %c0_0] : memref<8x784xf32, #tpu.memory_space<vmem>>, vector<8x784xf32>
    %c0_1 = arith.constant 0 : index
    %c0_2 = arith.constant 0 : index
    %1 = vector.load %arg2[%c0_1, %c0_2] : memref<1x784xf32, #tpu.memory_space<vmem>>, vector<1x784xf32>
    %2 = vector.broadcast %1 : vector<1x784xf32> to vector<8x784xf32>
    %3 = arith.mulf %0, %2 : vector<8x784xf32>
    %cst = arith.constant dense<0.000000e+00> : vector<8xf32>
    %4 = vector.multi_reduction <add>, %3, %cst [1] : vector<8x784xf32> to vector<8xf32>
    %5 = vector.shape_cast %4 : vector<8xf32> to vector<8x1xf32>
    %c0_3 = arith.constant 0 : index
    %6 = memref.load %arg3[%c0_3] : memref<1xf32, #tpu.memory_space<smem>>
    %7 = vector.broadcast %6 : f32 to vector<8x1xf32>
    %8 = arith.addf %5, %7 : vector<8x1xf32>
    %cst_4 = arith.constant 0.000000e+00 : f32
    %9 = vector.broadcast %cst_4 : f32 to vector<8x1xf32>
    %10 = arith.subf %9, %8 : vector<8x1xf32>
    %11 = math.exp %10 : vector<8x1xf32>
    %cst_5 = arith.constant 1.000000e+00 : f32
    %12 = vector.broadcast %cst_5 : f32 to vector<8x1xf32>
    %13 = arith.addf %12, %11 : vector<8x1xf32>
    %14 = tpu.reciprocal %13 {approx = true} : vector<8x1xf32> -> vector<8x1xf32>
    %c0_6 = arith.constant 0 : index
    %c0_7 = arith.constant 0 : index
    %15 = vector.load %arg4[%c0_6, %c0_7] : memref<8x1xf32, #tpu.memory_space<vmem>>, vector<8x1xf32>
    tpu.vector_store %arg4[%c0_6, %c0_7], %14 {strides = array<i32>} : memref<8x1xf32, #tpu.memory_space<vmem>>, vector<8x1xf32>,
    return
  }
  func.func @transform_0(%arg0: i32) -> (i32, i32) {
    %c0_i32 = arith.constant 0 : i32
    %c0_i32_0 = arith.constant 0 : i32
    return %arg0, %c0_i32 : i32, i32
  }
  func.func @transform_1(%arg0: i32) -> (i32, i32) {
    %c0_i32 = arith.constant 0 : i32
    %c0_i32_0 = arith.constant 0 : i32
    %c0_i32_1 = arith.constant 0 : i32
    return %c0_i32, %c0_i32_0 : i32, i32
  }
  func.func @transform_2(%arg0: i32) -> i32 {
    %c0_i32 = arith.constant 0 : i32
    %c0_i32_0 = arith.constant 0 : i32
    return %c0_i32 : i32
  }
  func.func @transform_3(%arg0: i32) -> (i32, i32) {
    %c0_i32 = arith.constant 0 : i32
    %c0_i32_0 = arith.constant 0 : i32
    return %arg0, %c0_i32 : i32, i32
  }
}

</mosaic_0001>

<llo_original>
// kernel: tpu_custom_call.1
$region0: #{tpu_custom_call.1}
  #allocation0 [shape = 'u32[]', space=smem, size = 0x4, offset = 0x4, fixed_abs, tag = 'smem constant byte address 0x4 - core index']
  #allocation1 [shape = 'u32[72,128]{1,0:T(1,128)}', space=vmem, size = 0x9000, scoped, tag = 'internal scratch']
  #allocation2 [shape = 'f32[1]{0:T(128)S(6)}', space=smem, size = 0x200, scoped, tag = 'scoped memory for tpu_custom_call.1']
  %s0 = inlined_call_operand.hbm [shape: f32[8,784], index: 0, kind: input, shape index: {}]
  %s1 = inlined_call_operand.hbm [shape: f32[1,784], index: 1, kind: input, shape index: {}]
  %s2 = inlined_call_operand.<no memory space> [shape: f32[1], index: 2, kind: input, shape index: {}]
  %s3 = inlined_call_operand.vmem [shape: f32[8,1], index: 3, kind: output, shape index: {}]
  %s4 = sld [smem:[#allocation0]]
  $region30: #{tpu_custom_call.1} parent=0
    _
  %s6 = ssub.s32 1, %s4
  %s7 = scalar_select 0, %s6, %s4
  %8 = sst [smem:[#allocation2]] %s2
  $region1: #{tpu_custom_call.1} parent=0
    #allocation3 [shape = 'u8[28672]{0}', space=vmem, size = 0x7000, scoped, tag = 'input window, operand 0, single buffered']
    #allocation4 [shape = 's32[1]{0}', space=sflag, size = 0x4, scoped, tag = 'scoped memory for tpu_custom_call.1']
    #allocation5 [shape = 'u8[3584]{0}', space=vmem, size = 0x1000, scoped, tag = 'input window, operand 1, single buffered']
    #allocation6 [shape = 's32[1]{0}', space=sflag, size = 0x4, scoped, tag = 'scoped memory for tpu_custom_call.1']
    %9 = vsyncpa [#allocation4], 0
    %10 = vsyncpa [#allocation6], 0
    // Predicated region
    $region2: #{tpu_custom_call.1} parent=1 // pred_check
      _
    $region3: #{tpu_custom_call.1} parent=1 // pred_check_branch
      %12 = sbr.rel (0) target = $region5
    $region4: #{tpu_custom_call.1} parent=1 // pred_region
      %14 = vsyncadd [#allocation4], 0
      %s16 = sshll.u32 %s0, 4
      %s17 = int_to_ptr.hbm [resolvable:$true] %s16
      %s18 = sshll.u32 [#allocation3], 4
      %s19 = int_to_ptr.vmem [resolvable:$true] %s18
      %21 = dma.hbm_to_vmem [thread:$0]  %s17, 896, %s19, [#allocation4]
    $region5: #{tpu_custom_call.1} parent=1 // pred_fallthru
      _
    // Predicated region
    $region6: #{tpu_custom_call.1} parent=1 // pred_check
      _
    $region7: #{tpu_custom_call.1} parent=1 // pred_check_branch
      %23 = sbr.rel (0) target = $region9
    $region8: #{tpu_custom_call.1} parent=1 // pred_region
      %25 = vsyncadd [#allocation6], 0
      %s27 = sshll.u32 %s1, 4
      %s28 = int_to_ptr.hbm [resolvable:$true] %s27
      %s29 = sshll.u32 [#allocation5], 4
      %s30 = int_to_ptr.vmem [resolvable:$true] %s29
      %32 = dma.hbm_to_vmem [thread:$0]  %s28, 112, %s30, [#allocation6]
    $region9: #{tpu_custom_call.1} parent=1 // pred_fallthru
      _
    // Predicated region
    $region10: #{tpu_custom_call.1} parent=1 // pred_check
      _
    $region11: #{tpu_custom_call.1} parent=1 // pred_check_branch
      %34 = sbr.rel (0) target = $region13
    $region12: #{tpu_custom_call.1} parent=1 // pred_region
      _
    $region13: #{tpu_custom_call.1} parent=1 // pred_fallthru
      _
    // Predicated region
    $region14: #{tpu_custom_call.1} parent=1 // pred_check
      _
    $region15: #{tpu_custom_call.1} parent=1 // pred_check_branch
      %36 = sbr.rel (0) target = $region17
    $region16: #{tpu_custom_call.1} parent=1 // pred_region
      %38 = dma.done [#allocation4], 896
    $region17: #{tpu_custom_call.1} parent=1 // pred_fallthru
      _
    // Predicated region
    $region18: #{tpu_custom_call.1} parent=1 // pred_check
      _
    $region19: #{tpu_custom_call.1} parent=1 // pred_check_branch
      %40 = sbr.rel (0) target = $region21
    $region20: #{tpu_custom_call.1} parent=1 // pred_region
      %42 = dma.done [#allocation6], 112
    $region21: #{tpu_custom_call.1} parent=1 // pred_fallthru
      _
    %v43 = vld [vmem:[#allocation3] sm:$0xff]
    %v44 = vld [vmem:[#allocation3 + $0x8] sm:$0xff]
    %v45 = vld [vmem:[#allocation3 + $0x10] sm:$0xff]
    %v46 = vld [vmem:[#allocation3 + $0x18] sm:$0xff]
    %v47 = vld [vmem:[#allocation3 + $0x20] sm:$0xff]
    %v48 = vld [vmem:[#allocation3 + $0x28] sm:$0xff]
    %v49 = vld [vmem:[#allocation3 + $0x30] sm:$0xff]
    %v50 = vld [vmem:[#allocation5] sm:$0x7f]
    %v52 = vperm.slane %v50, 0
    %v53 = vperm.slane %v50, 1
    %v54 = vperm.slane %v50, 2
    %v55 = vperm.slane %v50, 3
    %v56 = vperm.slane %v50, 4
    %v57 = vperm.slane %v50, 5
    %v58 = vperm.slane %v50, 6
    %v66 = vmul.f32 %v43, %v52
    %v67 = vmul.f32 %v44, %v53
    %v68 = vmul.f32 %v45, %v54
    %v69 = vmul.f32 %v46, %v55
    %v70 = vmul.f32 %v47, %v56
    %v71 = vmul.f32 %v48, %v57
    %v72 = vmul.f32 %v49, %v58
    %v73 = vadd.f32 %v66, %v67
    %v74 = vadd.f32 %v73, %v68
    %v75 = vadd.f32 %v74, %v69
    %v76 = vadd.f32 %v75, %v70
    %v77 = vadd.f32 %v76, %v71
    %vm78 = vcmask 130048
    %v79 = vsel %vm78, %v72, 0.0
    %v80 = vadd.f32 %v77, %v79
    %81 = vadd.xlane.f32.xlu0 %v80
    %v82 = vpop.xlane.xlu0 %81
    %s83 = sld [smem:[#allocation2]]
    %v84 = vstv %s83
    %v85 = vadd.f32 %v82, %v84
    %v86 = vsub.f32 0.0, %v85
    %v87 = vmul.f32 %v86, 1.442695
    %v88 = vpow.pop %v87
    %v89 = vadd.f32 %v88, 1.0
    %v90 = vrcp.pop %v89
    %vm91 = vcmask 7168
    %92 = vst.msk [vmem:[%s3] sm:$0xff] %vm91, %v90
    // Predicated region
    $region22: #{tpu_custom_call.1} parent=1 // pred_check
      _
    $region23: #{tpu_custom_call.1} parent=1 // pred_check_branch
      %94 = sbr.rel (0) target = $region25
    $region24: #{tpu_custom_call.1} parent=1 // pred_region
      _
    $region25: #{tpu_custom_call.1} parent=1 // pred_fallthru
      _
    // Predicated region
    $region26: #{tpu_custom_call.1} parent=1 // pred_check
      _
    $region27: #{tpu_custom_call.1} parent=1 // pred_check_branch
      %96 = sbr.rel (0) target = $region29
    $region28: #{tpu_custom_call.1} parent=1 // pred_region
      _
    $region29: #{tpu_custom_call.1} parent=1 // pred_fallthru
      _
    %97 = vsyncpa [#allocation4], 1
    %98 = vsyncpa [#allocation6], 1

</llo_original>
